<compile_context>
chip_gen: v7x
topology: tpu7x:2x2x1
jax: 0.10.0
libtpu: 0.0.40
codegen_flags: <defaults>
</compile_context>

<pallas_src>
import functools

import jax
import jax.numpy as jnp
from jax.experimental import pallas as pl
from jax.experimental.pallas import tpu as pltpu


def _adversary_kernel(x_ref, w1_ref, b1_ref, w2_ref, b2_ref, w3_ref, b3_ref,
                      out_ref):
    # Layer 1: Linear (bf16 MXU operands, f32 accumulate) + bias + ReLU (f32).
    h1 = jnp.dot(x_ref[...], w1_ref[...],
                 preferred_element_type=jnp.float32) + b1_ref[...]
    h1 = jnp.maximum(h1, 0.0)
    # Dropout(0.3) -> identity in eval mode.

    # Layer 2: Linear + ReLU (activation recast to bf16 for the MXU).
    h2 = jnp.dot(h1.astype(jnp.bfloat16), w2_ref[...],
                 preferred_element_type=jnp.float32) + b2_ref[...]
    h2 = jnp.maximum(h2, 0.0)
    # Dropout(0.3) -> identity in eval mode.

    # Layer 3: Linear (logits). Output columns are zero-padded to a
    # lane-dense (multiple-of-128) slab, so this is an unmasked store.
    logits = jnp.dot(h2.astype(jnp.bfloat16), w3_ref[...],
                     preferred_element_type=jnp.float32) + b3_ref[...]
    out_ref[...] = logits.astype(out_ref.dtype)


@functools.partial(jax.jit, static_argnames=("block_b",))
def adversary_forward(x, params, *, block_b=None):
    """Fused 3-layer MLP forward. x: [B, input_dim] float32 -> [B, A]."""
    w1, b1, w2, b2, w3, b3 = (params["w1"], params["b1"], params["w2"],
                              params["b2"], params["w3"], params["b3"])
    B, D_in = x.shape
    H1 = w1.shape[1]
    H2 = w2.shape[1]
    A = w3.shape[1]

    # ---- batch tiling ------------------------------------------------------
    # 512-row tiles amortize the ~0.35us/step overhead and fill the MXU's M
    # dimension; >=2 grid steps also shard across both v7x TensorCores.
    if block_b is None:
        block_b = 512 if B > 512 else B
    # bf16 activations pack 16 rows per vreg sublane group; keep tiles
    # (16, 128)-friendly (also satisfies the f32 (8, 128) constraint).
    block_b = max(16, ((int(block_b) + 15) // 16) * 16)
    B_pad = ((B + block_b - 1) // block_b) * block_b
    assert block_b % 16 == 0 and B_pad % block_b == 0
    if B_pad != B:
        x = jnp.pad(x, ((0, B_pad - B), (0, 0)))

    # ---- lane-dense output: pad num_attributes to a multiple of 128 --------
    A_pad = ((A + 127) // 128) * 128
    if A_pad != A:
        w3 = jnp.pad(w3, ((0, 0), (0, A_pad - A)))
        b3 = jnp.pad(b3, ((0, 0), (0, A_pad - A)))

    # ---- bf16 MXU operands; biases stay f32 for the f32 epilogue -----------
    x_bf = x.astype(jnp.bfloat16)
    w1_bf = w1.astype(jnp.bfloat16)
    w2_bf = w2.astype(jnp.bfloat16)
    w3_bf = w3.astype(jnp.bfloat16)
    b1_f = b1.astype(jnp.float32)
    b2_f = b2.astype(jnp.float32)
    b3_f = b3.astype(jnp.float32)

    grid = (B_pad // block_b,)

    def rep(shape):
        # Weights/biases are identical for every grid step: single-buffer
        # them so they don't take 2x VMEM when hidden_dim scales up.
        return pl.BlockSpec(shape, lambda i: (0, 0),
                            pipeline_mode=pl.Buffered(1))

    in_specs = [
        pl.BlockSpec((block_b, D_in), lambda i: (i, 0)),   # x tile
        rep((D_in, H1)),                                   # w1 (replicated)
        rep((1, H1)),                                      # b1
        rep((H1, H2)),                                     # w2
        rep((1, H2)),                                      # b2
        rep((H2, A_pad)),                                  # w3 (padded cols)
        rep((1, A_pad)),                                   # b3 (padded cols)
    ]
    out_spec = pl.BlockSpec((block_b, A_pad), lambda i: (i, 0))

    out = pl.pallas_call(
        _adversary_kernel,
        out_shape=jax.ShapeDtypeStruct((B_pad, A_pad), jnp.float32),
        grid_spec=pltpu.PrefetchScalarGridSpec(
            num_scalar_prefetch=0,
            grid=grid,
            in_specs=in_specs,
            out_specs=out_spec,
        ),
        compiler_params=pltpu.CompilerParams(
            dimension_semantics=("parallel",)),
        # Shapes here are tiny; if hidden_dim scales into the thousands, set
        # vmem_limit_bytes explicitly (v5e scoped default is only 16 MiB).
    )(x_bf, w1_bf, b1_f, w2_bf, b2_f, w3_bf, b3_f)

    return out[:B, :A].astype(x.dtype)


def init_adversary_params(key, input_dim, hidden_dim, num_attributes,
                          dtype=jnp.float32):
    """Deterministic init mimicking torch.nn.Linear (U[-1/sqrt(fan_in), ..])."""
    def linear(k, fan_in, fan_out):
        kw, kb = jax.random.split(k)
        bound = 1.0 / jnp.sqrt(fan_in)
        w = jax.random.uniform(kw, (fan_in, fan_out), dtype, -bound, bound)
        b = jax.random.uniform(kb, (1, fan_out), dtype, -bound, bound)
        return w, b

    k1, k2, k3 = jax.random.split(key, 3)
    w1, b1 = linear(k1, input_dim, hidden_dim)
    w2, b2 = linear(k2, hidden_dim, hidden_dim // 2)
    w3, b3 = linear(k3, hidden_dim // 2, num_attributes)
    return {"w1": w1, "b1": b1, "w2": w2, "b2": b2, "w3": w3, "b3": b3}


def adversary_reference_f32(x, params):
    """Pure-JAX f32 reference of the same forward (eval-mode dropout)."""
    h = jnp.maximum(x @ params["w1"] + params["b1"], 0.0)
    h = jnp.maximum(h @ params["w2"] + params["b2"], 0.0)
    return h @ params["w3"] + params["b3"]


def adversary_reference_bf16(x, params):
    """Mirrors the kernel's bf16-operand / f32-accumulate arithmetic."""
    bf = jnp.bfloat16
    h = jnp.maximum(
        jnp.dot(x.astype(bf), params["w1"].astype(bf),
                preferred_element_type=jnp.float32) + params["b1"], 0.0)
    h = jnp.maximum(
        jnp.dot(h.astype(bf), params["w2"].astype(bf),
                preferred_element_type=jnp.float32) + params["b2"], 0.0)
    return jnp.dot(h.astype(bf), params["w3"].astype(bf),
                   preferred_element_type=jnp.float32) + params["b3"]


if __name__ == "__main__":
    # Small shapes consistent with the module: features of dim 32, hidden 32.
    batch = 8
    input_dim = 32
    hidden_dim = 32
    num_attributes = 4

    key = jax.random.PRNGKey(0)
    kx, kp, kx2 = jax.random.split(key, 3)
    params = init_adversary_params(kp, input_dim, hidden_dim, num_attributes)

    x = jax.random.normal(kx, (batch, input_dim), jnp.float32)
    out = jax.block_until_ready(adversary_forward(x, params))
    assert out.shape == (batch, num_attributes)
    assert jnp.allclose(out, adversary_reference_bf16(x, params),
                        atol=1e-3, rtol=1e-3), "mismatch vs bf16 reference"
    assert jnp.allclose(out, adversary_reference_f32(x, params),
                        atol=3e-2, rtol=3e-2), "mismatch vs f32 reference"

    # Larger batch exercising the multi-step "parallel" grid (512-row tiles,
    # ragged tail padded) -> both TensorCores on v7x.
    xb = jax.random.normal(kx2, (1000, input_dim), jnp.float32)
    outb = jax.block_until_ready(adversary_forward(xb, params, block_b=512))
    assert outb.shape == (1000, num_attributes)
    assert jnp.allclose(outb, adversary_reference_bf16(xb, params),
                        atol=1e-3, rtol=1e-3), "mismatch vs bf16 reference (big)"

    print("KERNEL_OK")
</pallas_src>

<mosaic_0001>
module attributes {stable_mosaic.version = 11 : i64} {
  func.func @_adversary_kernel(%arg0: i32, %arg1: memref<16x32xbf16, #tpu.memory_space<vmem>>, %arg2: memref<32x32xbf16, #tpu.memory_space<vmem>>, %arg3: memref<1x32xf32, #tpu.memory_space<vmem>>, %arg4: memref<32x16xbf16, #tpu.memory_space<vmem>>, %arg5: memref<1x16xf32, #tpu.memory_space<vmem>>, %arg6: memref<16x128xbf16, #tpu.memory_space<vmem>>, %arg7: memref<1x128xf32, #tpu.memory_space<vmem>>, %arg8: memref<16x128xf32, #tpu.memory_space<vmem>>) attributes {dimension_semantics = [#tpu.dimension_semantics<parallel>], iteration_bounds = array<i64: 1>, scalar_prefetch = 0 : i64, scratch_operands = 0 : i64, tpu.core_type = #tpu.core_type<tc>, window_params = [{transform_indices = @transform_0, window_bounds = array<i64: 16, 32>}, {pipeline_mode = #tpu.pipeline_mode<synchronous>, transform_indices = @transform_1, window_bounds = array<i64: 32, 32>}, {pipeline_mode = #tpu.pipeline_mode<synchronous>, transform_indices = @transform_2, window_bounds = array<i64: 1, 32>}, {pipeline_mode = #tpu.pipeline_mode<synchronous>, transform_indices = @transform_3, window_bounds = array<i64: 32, 16>}, {pipeline_mode = #tpu.pipeline_mode<synchronous>, transform_indices = @transform_4, window_bounds = array<i64: 1, 16>}, {pipeline_mode = #tpu.pipeline_mode<synchronous>, transform_indices = @transform_5, window_bounds = array<i64: 16, 128>}, {pipeline_mode = #tpu.pipeline_mode<synchronous>, transform_indices = @transform_6, window_bounds = array<i64: 1, 128>}, {transform_indices = @transform_7, window_bounds = array<i64: 16, 128>}]} {
    %c0 = arith.constant 0 : index
    %c0_0 = arith.constant 0 : index
    %0 = vector.load %arg1[%c0, %c0_0] : memref<16x32xbf16, #tpu.memory_space<vmem>>, vector<16x32xbf16>
    %c0_1 = arith.constant 0 : index
    %c0_2 = arith.constant 0 : index
    %1 = vector.load %arg2[%c0_1, %c0_2] : memref<32x32xbf16, #tpu.memory_space<vmem>>, vector<32x32xbf16>
    %cst = arith.constant dense<0.000000e+00> : vector<16x32xf32>
    %2 = tpu.matmul %0, %1, %cst {dimension_numbers = #tpu.dot_dimension_numbers<[1], [0], [0], [1], [0, 0, 1, 1], [], []>} : vector<16x32xbf16>, vector<32x32xbf16>, vector<16x32xf32> -> vector<16x32xf32>
    %c0_3 = arith.constant 0 : index
    %c0_4 = arith.constant 0 : index
    %3 = vector.load %arg3[%c0_3, %c0_4] : memref<1x32xf32, #tpu.memory_space<vmem>>, vector<1x32xf32>
    %4 = vector.broadcast %3 : vector<1x32xf32> to vector<16x32xf32>
    %5 = arith.addf %2, %4 : vector<16x32xf32>
    %cst_5 = arith.constant 0.000000e+00 : f32
    %6 = vector.broadcast %cst_5 : f32 to vector<16x32xf32>
    %7 = arith.maximumf %5, %6 : vector<16x32xf32>
    %8 = arith.truncf %7 : vector<16x32xf32> to vector<16x32xbf16>
    %c0_6 = arith.constant 0 : index
    %c0_7 = arith.constant 0 : index
    %9 = vector.load %arg4[%c0_6, %c0_7] : memref<32x16xbf16, #tpu.memory_space<vmem>>, vector<32x16xbf16>
    %cst_8 = arith.constant dense<0.000000e+00> : vector<16x16xf32>
    %10 = tpu.matmul %8, %9, %cst_8 {dimension_numbers = #tpu.dot_dimension_numbers<[1], [0], [0], [1], [0, 0, 1, 1], [], []>} : vector<16x32xbf16>, vector<32x16xbf16>, vector<16x16xf32> -> vector<16x16xf32>
    %c0_9 = arith.constant 0 : index
    %c0_10 = arith.constant 0 : index
    %11 = vector.load %arg5[%c0_9, %c0_10] : memref<1x16xf32, #tpu.memory_space<vmem>>, vector<1x16xf32>
    %12 = vector.broadcast %11 : vector<1x16xf32> to vector<16x16xf32>
    %13 = arith.addf %10, %12 : vector<16x16xf32>
    %cst_11 = arith.constant 0.000000e+00 : f32
    %14 = vector.broadcast %cst_11 : f32 to vector<16x16xf32>
    %15 = arith.maximumf %13, %14 : vector<16x16xf32>
    %16 = arith.truncf %15 : vector<16x16xf32> to vector<16x16xbf16>
    %c0_12 = arith.constant 0 : index
    %c0_13 = arith.constant 0 : index
    %17 = vector.load %arg6[%c0_12, %c0_13] : memref<16x128xbf16, #tpu.memory_space<vmem>>, vector<16x128xbf16>
    %cst_14 = arith.constant dense<0.000000e+00> : vector<16x128xf32>
    %18 = tpu.matmul %16, %17, %cst_14 {dimension_numbers = #tpu.dot_dimension_numbers<[1], [0], [0], [1], [0, 0, 1, 1], [], []>} : vector<16x16xbf16>, vector<16x128xbf16>, vector<16x128xf32> -> vector<16x128xf32>
    %c0_15 = arith.constant 0 : index
    %c0_16 = arith.constant 0 : index
    %19 = vector.load %arg7[%c0_15, %c0_16] : memref<1x128xf32, #tpu.memory_space<vmem>>, vector<1x128xf32>
    %20 = vector.broadcast %19 : vector<1x128xf32> to vector<16x128xf32>
    %21 = arith.addf %18, %20 : vector<16x128xf32>
    %c0_17 = arith.constant 0 : index
    %c0_18 = arith.constant 0 : index
    %22 = vector.load %arg8[%c0_17, %c0_18] : memref<16x128xf32, #tpu.memory_space<vmem>>, vector<16x128xf32>
    tpu.vector_store %arg8[%c0_17, %c0_18], %21 {strides = array<i32>} : memref<16x128xf32, #tpu.memory_space<vmem>>, vector<16x128xf32>,
    return
  }
  func.func @transform_0(%arg0: i32) -> (i32, i32) {
    %c0_i32 = arith.constant 0 : i32
    %c0_i32_0 = arith.constant 0 : i32
    return %arg0, %c0_i32 : i32, i32
  }
  func.func @transform_1(%arg0: i32) -> (i32, i32) {
    %c0_i32 = arith.constant 0 : i32
    %c0_i32_0 = arith.constant 0 : i32
    %c0_i32_1 = arith.constant 0 : i32
    return %c0_i32, %c0_i32_0 : i32, i32
  }
  func.func @transform_2(%arg0: i32) -> (i32, i32) {
    %c0_i32 = arith.constant 0 : i32
    %c0_i32_0 = arith.constant 0 : i32
    %c0_i32_1 = arith.constant 0 : i32
    return %c0_i32, %c0_i32_0 : i32, i32
  }
  func.func @transform_3(%arg0: i32) -> (i32, i32) {
    %c0_i32 = arith.constant 0 : i32
    %c0_i32_0 = arith.constant 0 : i32
    %c0_i32_1 = arith.constant 0 : i32
    return %c0_i32, %c0_i32_0 : i32, i32
  }
  func.func @transform_4(%arg0: i32) -> (i32, i32) {
    %c0_i32 = arith.constant 0 : i32
    %c0_i32_0 = arith.constant 0 : i32
    %c0_i32_1 = arith.constant 0 : i32
    return %c0_i32, %c0_i32_0 : i32, i32
  }
  func.func @transform_5(%arg0: i32) -> (i32, i32) {
    %c0_i32 = arith.constant 0 : i32
    %c0_i32_0 = arith.constant 0 : i32
    %c0_i32_1 = arith.constant 0 : i32
    return %c0_i32, %c0_i32_0 : i32, i32
  }
  func.func @transform_6(%arg0: i32) -> (i32, i32) {
    %c0_i32 = arith.constant 0 : i32
    %c0_i32_0 = arith.constant 0 : i32
    %c0_i32_1 = arith.constant 0 : i32
    return %c0_i32, %c0_i32_0 : i32, i32
  }
  func.func @transform_7(%arg0: i32) -> (i32, i32) {
    %c0_i32 = arith.constant 0 : i32
    %c0_i32_0 = arith.constant 0 : i32
    return %arg0, %c0_i32 : i32, i32
  }
}

</mosaic_0001>

<llo_original>
// kernel: adversary_forward.1
$region0: #{adversary_forward.1}
  #allocation0 [shape = 'u32[]', space=smem, size = 0x4, offset = 0x4, fixed_abs, tag = 'smem constant byte address 0x4 - core index']
  #allocation1 [shape = 'u32[144,128]{1,0:T(1,128)}', space=vmem, size = 0x12000, scoped, tag = 'internal scratch']
  %s0 = inlined_call_operand.vmem [shape: bf16[16,32], index: 0, kind: input, shape index: {}]
  %s1 = inlined_call_operand.vmem [shape: bf16[32,32], index: 1, kind: input, shape index: {}]
  %s2 = inlined_call_operand.vmem [shape: f32[1,32], index: 2, kind: input, shape index: {}]
  %s3 = inlined_call_operand.vmem [shape: bf16[32,16], index: 3, kind: input, shape index: {}]
  %s4 = inlined_call_operand.vmem [shape: f32[1,16], index: 4, kind: input, shape index: {}]
  %s5 = inlined_call_operand.vmem [shape: bf16[16,128], index: 5, kind: input, shape index: {}]
  %s6 = inlined_call_operand.vmem [shape: f32[1,128], index: 6, kind: input, shape index: {}]
  %s7 = inlined_call_operand.vmem [shape: f32[16,128], index: 7, kind: output, shape index: {}]
  %s8 = sld [smem:[#allocation0]]
  $region38: #{adversary_forward.1} parent=0
    _
  %s10 = ssub.s32 1, %s8
  %s11 = scalar_select 0, %s10, %s8
  // Predicated region
  $region2: #{adversary_forward.1} parent=0 // pred_check
    _
  $region3: #{adversary_forward.1} parent=0 // pred_check_branch
    %13 = sbr.rel (0) target = $region5
  $region4: #{adversary_forward.1} parent=0 // pred_region
    _
  $region5: #{adversary_forward.1} parent=0 // pred_fallthru
    _
  // Predicated region
  $region6: #{adversary_forward.1} parent=0 // pred_check
    _
  $region7: #{adversary_forward.1} parent=0 // pred_check_branch
    %15 = sbr.rel (0) target = $region9
  $region8: #{adversary_forward.1} parent=0 // pred_region
    _
  $region9: #{adversary_forward.1} parent=0 // pred_fallthru
    _
  // Predicated region
  $region10: #{adversary_forward.1} parent=0 // pred_check
    _
  $region11: #{adversary_forward.1} parent=0 // pred_check_branch
    %17 = sbr.rel (0) target = $region13
  $region12: #{adversary_forward.1} parent=0 // pred_region
    _
  $region13: #{adversary_forward.1} parent=0 // pred_fallthru
    _
  // Predicated region
  $region14: #{adversary_forward.1} parent=0 // pred_check
    _
  $region15: #{adversary_forward.1} parent=0 // pred_check_branch
    %19 = sbr.rel (0) target = $region17
  $region16: #{adversary_forward.1} parent=0 // pred_region
    _
  $region17: #{adversary_forward.1} parent=0 // pred_fallthru
    _
  // Predicated region
  $region18: #{adversary_forward.1} parent=0 // pred_check
    _
  $region19: #{adversary_forward.1} parent=0 // pred_check_branch
    %21 = sbr.rel (0) target = $region21
  $region20: #{adversary_forward.1} parent=0 // pred_region
    _
  $region21: #{adversary_forward.1} parent=0 // pred_fallthru
    _
  // Predicated region
  $region22: #{adversary_forward.1} parent=0 // pred_check
    _
  $region23: #{adversary_forward.1} parent=0 // pred_check_branch
    %23 = sbr.rel (0) target = $region25
  $region24: #{adversary_forward.1} parent=0 // pred_region
    _
  $region25: #{adversary_forward.1} parent=0 // pred_fallthru
    _
  // Predicated region
  $region26: #{adversary_forward.1} parent=0 // pred_check
    _
  $region27: #{adversary_forward.1} parent=0 // pred_check_branch
    %25 = sbr.rel (0) target = $region29
  $region28: #{adversary_forward.1} parent=0 // pred_region
    _
  $region29: #{adversary_forward.1} parent=0 // pred_fallthru
    _
  %v27 = vld [vmem:[%s0] sm:$0xf]
  %v28 = vld [vmem:[%s0 + $0x4] sm:$0xf]
  %v29 = vld [vmem:[%s1] sm:$0xf]
  %v30 = vld [vmem:[%s1 + $0x4] sm:$0xf]
  %v31 = vld [vmem:[%s1 + $0x8] sm:$0xf]
  %v32 = vld [vmem:[%s1 + $0xc] sm:$0xf]
  %v33 = vld [vmem:[%s2] sm:$0x1]
  %v35 = vlaneseq
  %v36 = vshrl.u32 %v35, 7
  %v37 = vsub.s32 0, %v36
  %v38 = vrot.slane %v33, %v37
  %v42 = vunpack.c.l.b16 %v27
  %v43 = vunpack.c.l.b16 %v28
  %v44 = vpack.c.b16 %v43, %v42
  %v49 = vunpack.c.l.b16 %v29
  %v50 = vunpack.c.l.b16 %v30
  %v51 = vunpack.c.l.b16 %v31
  %v52 = vunpack.c.l.b16 %v32
  %v53 = vpack.c.b16 %v50, %v49
  %v54 = vpack.c.b16 %v52, %v51
  %vm57 = vcmask 261120
  %v59 = vsel %vm57, %v44, 0
  %61 = vmatprep.subr.bf16.mxu0 0
  %62 = vmatpush1.bf16.msra.mxu0 %v53
  %63 = vmatprep.subr.bf16.mxu0 0
  %64 = vmatpush1.bf16.msra.mxu0 %v54
  %65 = vmatprep.subr.bf16.mxu0 0
  %66 = vmatpush1.bf16.msra.mxu0 0
  %67 = vmatprep.subr.bf16.mxu0 0
  %68 = vmatpush1.bf16.msra.mxu0 0
  %69 = vmatprep.subr.bf16.mxu0 0
  %70 = vmatpush1.bf16.msra.mxu0 0
  %71 = vmatprep.subr.bf16.mxu0 0
  %72 = vmatpush1.bf16.msra.mxu0 0
  %73 = vmatprep.subr.bf16.mxu0 0
  %74 = vmatpush1.bf16.msra.mxu0 0
  %75 = vmatprep.subr.bf16.mxu0 0
  %76 = vmatpush1.bf16.msra.mxu0 0
  %77 = vmatprep.subr.bf16.mxu0 0
  %78 = vmatpush1.bf16.msra.mxu0 0
  %79 = vmatprep.subr.bf16.mxu0 0
  %80 = vmatpush1.bf16.msra.mxu0 0
  %81 = vmatprep.subr.bf16.mxu0 0
  %82 = vmatpush1.bf16.msra.mxu0 0
  %83 = vmatprep.subr.bf16.mxu0 0
  %84 = vmatpush1.bf16.msra.mxu0 0
  %85 = vmatprep.subr.bf16.mxu0 0
  %86 = vmatpush1.bf16.msra.mxu0 0
  %87 = vmatprep.subr.bf16.mxu0 0
  %88 = vmatpush1.bf16.msra.mxu0 0
  %89 = vmatprep.subr.bf16.mxu0 0
  %90 = vmatpush1.bf16.msra.mxu0 0
  %91 = vmatprep.subr.bf16.mxu0 0
  %92 = vmatpush1.bf16.msra.mxu0 0
  %93 = vmatprep.mubr.bf16.mxu0 0
  %94 = vmatmul.mubr.bf16.gmra.mrb[0].mxu0 %v59
  %v95 = vpop.f32.mrb[0].mxu0
  %v96 = vadd.f32 %v38, %v95
  %v97 = vpop.f32.mrb[0].mxu0
  %v98 = vpop.f32.mrb[0].mxu0
  %v99 = vadd.f32 %v38, %v98
  %v100 = vpop.f32.mrb[0].mxu0
  %101 = vdwg.mxu0
  %v102 = vmax.f32 %v96, 0.0
  %v103 = vmax.f32 %v99, 0.0
  %v104 = vpack.c.bf16 %v103, %v102
  %v105 = vld [vmem:[%s3] sm:$0xf]
  %v106 = vld [vmem:[%s3 + $0x4] sm:$0xf]
  %v107 = vld [vmem:[%s3 + $0x8] sm:$0xf]
  %v108 = vld [vmem:[%s3 + $0xc] sm:$0xf]
  %v109 = vld [vmem:[%s4] sm:$0x1]
  %v111 = vlaneseq
  %v112 = vshrl.u32 %v111, 7
  %v113 = vsub.s32 0, %v112
  %v114 = vrot.slane %v109, %v113
  %v120 = vunpack.c.l.b16 %v105
  %v121 = vunpack.c.l.b16 %v106
  %v122 = vunpack.c.l.b16 %v107
  %v123 = vunpack.c.l.b16 %v108
  %v124 = vpack.c.b16 %v121, %v120
  %v125 = vpack.c.b16 %v123, %v122
  %v129 = vsel %vm57, %v104, 0
  %131 = vmatprep.subr.bf16.mxu0 0
  %132 = vmatpush1.bf16.msra.mxu0 %v124
  %133 = vmatprep.subr.bf16.mxu0 0
  %134 = vmatpush1.bf16.msra.mxu0 %v125
  %135 = vmatprep.subr.bf16.mxu0 0
  %136 = vmatpush1.bf16.msra.mxu0 0
  %137 = vmatprep.subr.bf16.mxu0 0
  %138 = vmatpush1.bf16.msra.mxu0 0
  %139 = vmatprep.subr.bf16.mxu0 0
  %140 = vmatpush1.bf16.msra.mxu0 0
  %141 = vmatprep.subr.bf16.mxu0 0
  %142 = vmatpush1.bf16.msra.mxu0 0
  %143 = vmatprep.subr.bf16.mxu0 0
  %144 = vmatpush1.bf16.msra.mxu0 0
  %145 = vmatprep.subr.bf16.mxu0 0
  %146 = vmatpush1.bf16.msra.mxu0 0
  %147 = vmatprep.subr.bf16.mxu0 0
  %148 = vmatpush1.bf16.msra.mxu0 0
  %149 = vmatprep.subr.bf16.mxu0 0
  %150 = vmatpush1.bf16.msra.mxu0 0
  %151 = vmatprep.subr.bf16.mxu0 0
  %152 = vmatpush1.bf16.msra.mxu0 0
  %153 = vmatprep.subr.bf16.mxu0 0
  %154 = vmatpush1.bf16.msra.mxu0 0
  %155 = vmatprep.subr.bf16.mxu0 0
  %156 = vmatpush1.bf16.msra.mxu0 0
  %157 = vmatprep.subr.bf16.mxu0 0
  %158 = vmatpush1.bf16.msra.mxu0 0
  %159 = vmatprep.subr.bf16.mxu0 0
  %160 = vmatpush1.bf16.msra.mxu0 0
  %161 = vmatprep.subr.bf16.mxu0 0
  %162 = vmatpush1.bf16.msra.mxu0 0
  %163 = vmatprep.mubr.bf16.mxu0 0
  %164 = vmatmul.mubr.bf16.gmra.mrb[0].mxu0 %v129
  %v165 = vpop.f32.mrb[0].mxu0
  %v166 = vadd.f32 %v114, %v165
  %v167 = vpop.f32.mrb[0].mxu0
  %v168 = vpop.f32.mrb[0].mxu0
  %v169 = vadd.f32 %v114, %v168
  %v170 = vpop.f32.mrb[0].mxu0
  %171 = vdwg.mxu0
  %v172 = vmax.f32 %v166, 0.0
  %v173 = vmax.f32 %v169, 0.0
  %v174 = vpack.c.bf16 %v173, %v172
  %v175 = vld [vmem:[%s5] sm:$0xf]
  %v176 = vld [vmem:[%s5 + $0x4] sm:$0xf]
  %v177 = vld [vmem:[%s6] sm:$0x1]
  %v179 = vlaneseq
  %v180 = vshrl.u32 %v179, 7
  %v181 = vsub.s32 0, %v180
  %v182 = vrot.slane %v177, %v181
  %v186 = vunpack.c.l.b16 %v175
  %v187 = vunpack.c.l.b16 %v176
  %v188 = vpack.c.b16 %v187, %v186
  %vm190 = vcmask 130048
  %v192 = vsel %vm190, %v174, 0
  %194 = vmatprep.subr.bf16.mxu0 0
  %195 = vmatpush1.bf16.msra.mxu0 %v188
  %196 = vmatprep.subr.bf16.mxu0 0
  %197 = vmatpush1.bf16.msra.mxu0 0
  %198 = vmatprep.subr.bf16.mxu0 0
  %199 = vmatpush1.bf16.msra.mxu0 0
  %200 = vmatprep.subr.bf16.mxu0 0
  %201 = vmatpush1.bf16.msra.mxu0 0
  %202 = vmatprep.subr.bf16.mxu0 0
  %203 = vmatpush1.bf16.msra.mxu0 0
  %204 = vmatprep.subr.bf16.mxu0 0
  %205 = vmatpush1.bf16.msra.mxu0 0
  %206 = vmatprep.subr.bf16.mxu0 0
  %207 = vmatpush1.bf16.msra.mxu0 0
  %208 = vmatprep.subr.bf16.mxu0 0
  %209 = vmatpush1.bf16.msra.mxu0 0
  %210 = vmatprep.subr.bf16.mxu0 0
  %211 = vmatpush1.bf16.msra.mxu0 0
  %212 = vmatprep.subr.bf16.mxu0 0
  %213 = vmatpush1.bf16.msra.mxu0 0
  %214 = vmatprep.subr.bf16.mxu0 0
  %215 = vmatpush1.bf16.msra.mxu0 0
  %216 = vmatprep.subr.bf16.mxu0 0
  %217 = vmatpush1.bf16.msra.mxu0 0
  %218 = vmatprep.subr.bf16.mxu0 0
  %219 = vmatpush1.bf16.msra.mxu0 0
  %220 = vmatprep.subr.bf16.mxu0 0
  %221 = vmatpush1.bf16.msra.mxu0 0
  %222 = vmatprep.subr.bf16.mxu0 0
  %223 = vmatpush1.bf16.msra.mxu0 0
  %224 = vmatprep.subr.bf16.mxu0 0
  %225 = vmatpush1.bf16.msra.mxu0 0
  %226 = vmatprep.mubr.bf16.mxu0 0
  %227 = vmatmul.mubr.bf16.gmra.mrb[0].mxu0 %v192
  %v228 = vpop.f32.mrb[0].mxu0
  %v229 = vadd.f32 %v182, %v228
  %v230 = vpop.f32.mrb[0].mxu0
  %v231 = vpop.f32.mrb[0].mxu0
  %v232 = vadd.f32 %v182, %v231
  %v233 = vpop.f32.mrb[0].mxu0
  %234 = vdwg.mxu0
  %235 = vst [vmem:[%s7] sm:$0xff] %v229
  %236 = vst [vmem:[%s7 + $0x8] sm:$0xff] %v232
  // Predicated region
  $region30: #{adversary_forward.1} parent=0 // pred_check
    _
  $region31: #{adversary_forward.1} parent=0 // pred_check_branch
    %238 = sbr.rel (0) target = $region33
  $region32: #{adversary_forward.1} parent=0 // pred_region
    _
  $region33: #{adversary_forward.1} parent=0 // pred_fallthru
    _
  // Predicated region
  $region34: #{adversary_forward.1} parent=0 // pred_check
    _
  $region35: #{adversary_forward.1} parent=0 // pred_check_branch
    %240 = sbr.rel (0) target = $region37
  $region36: #{adversary_forward.1} parent=0 // pred_region
    _
  $region37: #{adversary_forward.1} parent=0 // pred_fallthru
    _

</llo_original>
